<compile_context>
chip_gen: v7x
topology: tpu7x:2x2x1
jax: 0.10.0
libtpu: 0.0.40
codegen_flags: <defaults>
</compile_context>

<pallas_src>
import functools

import jax
import jax.numpy as jnp
from jax.experimental import pallas as pl
from jax.experimental.pallas import tpu as pltpu

TARGET_TILE_BYTES = 8 * 1024 * 1024     # ~8 MiB output tile (v6e/v7x sweet spot)
TN_MAX = 2048                           # lane tile cap (cols), multiple of 128
X_RESIDENT_MAX_BYTES = 1 * 1024 * 1024  # keep x fully VMEM-resident below this
VMEM_LIMIT_BYTES = 32 * 1024 * 1024     # explicit: v5e default (16 MiB) is too small


def _round_up(n: int, m: int) -> int:
    return ((n + m - 1) // m) * m


def _round_down(n: int, m: int) -> int:
    return max(m, (n // m) * m)


def _kernel_tiled_x(x_ref, y_ref, o_ref):
    # x_ref: (1, TN), y_ref: (TM, 1), o_ref: (TM, TN); broadcast add on the VPU.
    o_ref[...] = x_ref[...] + y_ref[...]


def _kernel_resident_x(x_ref, y_ref, o_ref, *, tn: int):
    # x_ref: (1, N0_in) fully resident; slice out the j-th lane tile.
    j = pl.program_id(1)
    start = pl.multiple_of(j * tn, 128)
    o_ref[...] = x_ref[:, pl.ds(start, tn)] + y_ref[...]


def outer_vecadd(x: jax.Array, y: jax.Array) -> jax.Array:
    assert x.dtype == jnp.float32 and y.dtype == jnp.float32
    N0 = x.shape[0]
    N1 = y.shape[0]

    # Lane tile: multiple of 128, capped; row tile fills the ~8 MiB byte budget.
    TN = min(TN_MAX, _round_up(N0, 128))
    tm_budget = _round_down(TARGET_TILE_BYTES // (TN * 4), 8)
    TM = min(_round_up(N1, 8), tm_budget)

    grid_i = pl.cdiv(N1, TM)
    grid_j = pl.cdiv(N0, TN)

    # v7x has 2 TensorCores sharing HBM: a 1-tile grid leaves one idle and
    # halves the achievable store bandwidth.  Split rows (or cols) if possible.
    if grid_i * grid_j == 1:
        if TM >= 16:
            TM = _round_up(TM // 2, 8)
        elif TN >= 256:
            TN = _round_up(TN // 2, 128)
        grid_i = pl.cdiv(N1, TM)
        grid_j = pl.cdiv(N0, TN)

    # Pad only the tiny 1-D inputs to tile multiples (so reads are in bounds).
    # The output keeps its exact shape: Pallas masks boundary-block stores.
    N0_in = grid_j * TN
    N1_in = grid_i * TM
    x2 = x.reshape(1, N0)
    y2 = y.reshape(N1, 1)
    if N0_in != N0:
        x2 = jnp.pad(x2, ((0, 0), (0, N0_in - N0)))
    if N1_in != N1:
        y2 = jnp.pad(y2, ((0, N1_in - N1), (0, 0)))

    if grid_j > 1 and N0_in * 4 <= X_RESIDENT_MAX_BYTES:
        # x DMA'd into VMEM once; kernel slices the current lane tile.
        kernel = functools.partial(_kernel_resident_x, tn=TN)
        x_spec = pl.BlockSpec((1, N0_in), lambda i, j: (0, 0))
    else:
        kernel = _kernel_tiled_x
        x_spec = pl.BlockSpec((1, TN), lambda i, j: (0, j))   # re-DMA only on j change

    out = pl.pallas_call(
        kernel,
        out_shape=jax.ShapeDtypeStruct((N1, N0), jnp.float32),
        grid=(grid_i, grid_j),
        in_specs=[
            x_spec,
            pl.BlockSpec((TM, 1), lambda i, j: (i, 0)),        # y: re-DMA only on i change
        ],
        out_specs=pl.BlockSpec((TM, TN), lambda i, j: (i, j)),
        compiler_params=pltpu.CompilerParams(
            dimension_semantics=("parallel", "parallel"),
            vmem_limit_bytes=VMEM_LIMIT_BYTES,
        ),
        cost_estimate=pl.CostEstimate(
            flops=N1 * N0,
            transcendentals=0,
            bytes_accessed=4 * (N1 * N0 + N1 + N0),
        ),
    )(x2, y2)
    return out


if __name__ == "__main__":
    key = jax.random.PRNGKey(0)
    kx, ky = jax.random.split(key)

    # Case 1: tiny, single-tile path (like the Triton test shapes).
    N0, N1 = 16, 8
    x = jax.random.normal(kx, (N0,), dtype=jnp.float32)
    y = jax.random.normal(ky, (N1,), dtype=jnp.float32)
    z = jax.block_until_ready(outer_vecadd(x, y))
    ref = y[:, None] + x[None, :]
    assert z.shape == (N1, N0)
    assert jnp.allclose(z, ref, atol=1e-6), "mismatch vs reference (small)"

    # Case 2: ragged shape, multi-row-tile grid, masked boundary stores.
    N0b, N1b = 300, 70
    xb = jax.random.normal(kx, (N0b,), dtype=jnp.float32)
    yb = jax.random.normal(ky, (N1b,), dtype=jnp.float32)
    zb = jax.block_until_ready(outer_vecadd(xb, yb))
    refb = yb[:, None] + xb[None, :]
    assert zb.shape == (N1b, N0b)
    assert jnp.allclose(zb, refb, atol=1e-6), "mismatch vs reference (ragged)"

    # Case 3: multi-column-tile grid, exercises the VMEM-resident-x + pl.ds path.
    N0c, N1c = 2500, 130
    xc = jax.random.normal(kx, (N0c,), dtype=jnp.float32)
    yc = jax.random.normal(ky, (N1c,), dtype=jnp.float32)
    zc = jax.block_until_ready(outer_vecadd(xc, yc))
    refc = yc[:, None] + xc[None, :]
    assert zc.shape == (N1c, N0c)
    assert jnp.allclose(zc, refc, atol=1e-6), "mismatch vs reference (resident-x)"

    print("KERNEL_OK")
</pallas_src>

<mosaic_0001>
module attributes {stable_mosaic.version = 11 : i64} {
  func.func @_kernel_tiled_x(%arg0: i32, %arg1: i32, %arg2: memref<1x128xf32, #tpu.memory_space<vmem>>, %arg3: memref<8x1xf32, #tpu.memory_space<vmem>>, %arg4: memref<8x128xf32, #tpu.memory_space<vmem>>) attributes {dimension_semantics = [#tpu.dimension_semantics<parallel>, #tpu.dimension_semantics<parallel>], iteration_bounds = array<i64: 1, 1>, scalar_prefetch = 0 : i64, scratch_operands = 0 : i64, tpu.core_type = #tpu.core_type<tc>, window_params = [{transform_indices = @transform_0, window_bounds = array<i64: 1, 128>}, {transform_indices = @transform_1, window_bounds = array<i64: 8, 1>}, {transform_indices = @transform_2, window_bounds = array<i64: 8, 128>}]} {
    %c0 = arith.constant 0 : index
    %c0_0 = arith.constant 0 : index
    %0 = vector.load %arg2[%c0, %c0_0] : memref<1x128xf32, #tpu.memory_space<vmem>>, vector<1x128xf32>
    %c0_1 = arith.constant 0 : index
    %c0_2 = arith.constant 0 : index
    %1 = vector.load %arg3[%c0_1, %c0_2] : memref<8x1xf32, #tpu.memory_space<vmem>>, vector<8x1xf32>
    %2 = vector.broadcast %0 : vector<1x128xf32> to vector<8x128xf32>
    %3 = vector.broadcast %1 : vector<8x1xf32> to vector<8x128xf32>
    %4 = arith.addf %2, %3 : vector<8x128xf32>
    %c0_3 = arith.constant 0 : index
    %c0_4 = arith.constant 0 : index
    %5 = vector.load %arg4[%c0_3, %c0_4] : memref<8x128xf32, #tpu.memory_space<vmem>>, vector<8x128xf32>
    tpu.vector_store %arg4[%c0_3, %c0_4], %4 {strides = array<i32>} : memref<8x128xf32, #tpu.memory_space<vmem>>, vector<8x128xf32>,
    return
  }
  func.func @transform_0(%arg0: i32, %arg1: i32) -> (i32, i32) {
    %c0_i32 = arith.constant 0 : i32
    %c0_i32_0 = arith.constant 0 : i32
    return %c0_i32, %arg1 : i32, i32
  }
  func.func @transform_1(%arg0: i32, %arg1: i32) -> (i32, i32) {
    %c0_i32 = arith.constant 0 : i32
    %c0_i32_0 = arith.constant 0 : i32
    return %arg0, %c0_i32 : i32, i32
  }
  func.func @transform_2(%arg0: i32, %arg1: i32) -> (i32, i32) {
    %c0_i32 = arith.constant 0 : i32
    return %arg0, %arg1 : i32, i32
  }
}

</mosaic_0001>

<llo_original>
// kernel: tpu_custom_call.1
$region0: #{tpu_custom_call.1}
  #allocation0 [shape = 'u32[]', space=smem, size = 0x4, offset = 0x4, fixed_abs, tag = 'smem constant byte address 0x4 - core index']
  #allocation1 [shape = 'u32[144,128]{1,0:T(1,128)}', space=vmem, size = 0x12000, scoped, tag = 'internal scratch']
  %s0 = inlined_call_operand.vmem [shape: f32[1,128], index: 0, kind: input, shape index: {}]
  %s1 = inlined_call_operand.vmem [shape: f32[8,1], index: 1, kind: input, shape index: {}]
  %s2 = inlined_call_operand.hbm [shape: f32[8,16], index: 2, kind: output, shape index: {}]
  %s3 = sld [smem:[#allocation0]]
  $region18: #{tpu_custom_call.1} parent=0
    _
  %s5 = ssub.s32 1, %s3
  %s6 = scalar_select 0, %s5, %s3
  $region1: #{tpu_custom_call.1} parent=0
    #allocation2 [shape = 'u8[4096]{0}', space=vmem, size = 0x1000, scoped, tag = 'output window, operand 0, single buffered']
    #allocation3 [shape = 's32[1]{0}', space=sflag, size = 0x4, scoped, tag = 'scoped memory for tpu_custom_call.1']
    %7 = vsyncpa [#allocation3], 0
    // Predicated region
    $region2: #{tpu_custom_call.1} parent=1 // pred_check
      _
    $region3: #{tpu_custom_call.1} parent=1 // pred_check_branch
      %9 = sbr.rel (0) target = $region5
    $region4: #{tpu_custom_call.1} parent=1 // pred_region
      _
    $region5: #{tpu_custom_call.1} parent=1 // pred_fallthru
      _
    // Predicated region
    $region6: #{tpu_custom_call.1} parent=1 // pred_check
      _
    $region7: #{tpu_custom_call.1} parent=1 // pred_check_branch
      %11 = sbr.rel (0) target = $region9
    $region8: #{tpu_custom_call.1} parent=1 // pred_region
      _
    $region9: #{tpu_custom_call.1} parent=1 // pred_fallthru
      _
    %v12 = vld [vmem:[%s0] sm:$0x1]
    %v13 = vld [vmem:[%s1] sm:$0xff]
    %v15 = vlaneseq
    %v16 = vshrl.u32 %v15, 7
    %v17 = vsub.s32 0, %v16
    %v18 = vrot.slane %v12, %v17
    %21 = vset.pattern.permute.xlu0 0
    %22 = vperm.xlu0 %21, %v13
    %v23 = vpop.permute.xlu0 %22
    %v25 = vadd.f32 %v18, %v23
    %26 = vst [vmem:[#allocation2] sm:$0xff] %v25
    // Predicated region
    $region10: #{tpu_custom_call.1} parent=1 // pred_check
      _
    $region11: #{tpu_custom_call.1} parent=1 // pred_check_branch
      %28 = sbr.rel (0) target = $region13
    $region12: #{tpu_custom_call.1} parent=1 // pred_region
      %s30 = ssub.s32 128, 128
      %31 = vsyncadd [#allocation3], %s30
      %s33 = sshll.u32 [#allocation2], 4
      %s34 = int_to_ptr.vmem [resolvable:$true] %s33
      %36 = dma.vmem_to_hbm [thread:$0]  %s34, 128, %s2, [#allocation3]
    $region13: #{tpu_custom_call.1} parent=1 // pred_fallthru
      _
    // Predicated region
    $region14: #{tpu_custom_call.1} parent=1 // pred_check
      _
    $region15: #{tpu_custom_call.1} parent=1 // pred_check_branch
      %38 = sbr.rel (0) target = $region17
    $region16: #{tpu_custom_call.1} parent=1 // pred_region
      %39 = dma.done [#allocation3], 128
    $region17: #{tpu_custom_call.1} parent=1 // pred_fallthru
      _
    %40 = vsyncpa [#allocation3], 1

</llo_original>
